<compile_context>
chip_gen: v5e
topology: v5e:2x2
jax: 0.10.0
libtpu: 0.0.40
codegen_flags: <defaults>
</compile_context>

<pallas_src>
import functools

import jax
import jax.numpy as jnp
from jax import lax
from jax.experimental import pallas as pl
from jax.experimental.pallas import tpu as pltpu


def _round_up(x, m):
    return ((x + m - 1) // m) * m


def layer_norm_kernel(x_ref, o_ref, *, eps):
    x = x_ref[...].astype(jnp.float32)                 # (tm, D)
    d = x.shape[-1]
    mu = jnp.mean(x, axis=-1, keepdims=True)           # per-row mean
    xc = x - mu
    # Unbiased variance (torch.var_mean(..., unbiased=True)): divide by D-1.
    # (For D == 1 this matches torch's NaN behavior: 0/0.)
    inv_dm1 = jnp.float32(1.0 / (d - 1)) if d > 1 else jnp.float32(jnp.nan)
    var = jnp.sum(xc * xc, axis=-1, keepdims=True) * inv_dm1
    inv = lax.rsqrt(var + jnp.float32(eps))            # EUP rsqrt (free slot)
    o_ref[...] = (xc * inv).astype(o_ref.dtype)


def _choose_tm(M, D, itemsize, *, target_bytes=2 << 20, vmem_budget=8 << 20):
    """Pick a row-tile size: ~target_bytes per input tile, capped by VMEM."""
    row_bytes = max(1, D * itemsize)
    tm = max(8, target_bytes // row_bytes)
    # in + out tiles, each double-buffered -> ~4x tile bytes resident.
    tm_cap = max(8, vmem_budget // (4 * row_bytes))
    tm = min(tm, tm_cap)
    # Never larger than the (8-rounded) problem, always a multiple of 8.
    tm = min(tm, _round_up(M, 8))
    return int(_round_up(tm, 8) if tm % 8 else tm)


def layer_norm(x, dim=-1, eps=1e-5):
    """LayerNorm over axis `dim` (single int axis), unbiased variance, no affine."""
    ndim = x.ndim
    dim = dim % ndim

    # Move the normalized axis last (no-op when dim is already last) and
    # flatten leading axes into rows.
    xm = jnp.moveaxis(x, dim, -1)
    lead_shape = xm.shape[:-1]
    D = xm.shape[-1]
    M = 1
    for s in lead_shape:
        M *= s
    x2 = xm.reshape(M, D)

    tm = _choose_tm(M, D, x.dtype.itemsize)
    M_pad = _round_up(M, tm)
    if M_pad != M:
        # Padded rows give var=0 -> rsqrt(eps): finite, sliced off below.
        x2 = jnp.pad(x2, ((0, M_pad - M), (0, 0)))

    out = pl.pallas_call(
        functools.partial(layer_norm_kernel, eps=eps),
        out_shape=jax.ShapeDtypeStruct((M_pad, D), x.dtype),
        grid_spec=pltpu.PrefetchScalarGridSpec(
            num_scalar_prefetch=0,
            grid=(M_pad // tm,),
            in_specs=[pl.BlockSpec((tm, D), lambda i: (i, 0))],
            out_specs=pl.BlockSpec((tm, D), lambda i: (i, 0)),
        ),
        compiler_params=pltpu.CompilerParams(
            dimension_semantics=("parallel",)),
    )(x2)

    out = out[:M].reshape(*lead_shape, D)
    return jnp.moveaxis(out, -1, dim)


def layer_norm_ref(x, dim=-1, eps=1e-5):
    """Pure-JAX reference mirroring torch.var_mean(unbiased=True) LayerNorm."""
    x32 = x.astype(jnp.float32)
    mu = jnp.mean(x32, axis=dim, keepdims=True)
    n = x32.shape[dim]
    var = jnp.sum((x32 - mu) ** 2, axis=dim, keepdims=True) / (n - 1)
    return ((x32 - mu) / jnp.sqrt(var + eps)).astype(x.dtype)


if __name__ == "__main__":
    key = jax.random.PRNGKey(0)

    # batch=2, seq=8, hidden=32; normalize over the hidden (last) dim.
    B, S, Dh = 2, 8, 32
    x = jax.random.normal(key, (B, S, Dh), jnp.float32)

    out = layer_norm(x, dim=-1, eps=1e-5)
    out = jax.block_until_ready(out)
    ref = layer_norm_ref(x, dim=-1, eps=1e-5)
    assert out.shape == x.shape
    assert jnp.allclose(out, ref, rtol=1e-5, atol=1e-5), float(
        jnp.max(jnp.abs(out - ref)))

    # Also exercise a non-last normalization axis (module takes arbitrary dim).
    out1 = jax.block_until_ready(layer_norm(x, dim=1, eps=1e-5))
    ref1 = layer_norm_ref(x, dim=1, eps=1e-5)
    assert jnp.allclose(out1, ref1, rtol=1e-5, atol=1e-5), float(
        jnp.max(jnp.abs(out1 - ref1)))

    print("KERNEL_OK")
</pallas_src>

<mosaic_0001>
module attributes {stable_mosaic.version = 11 : i64} {
  func.func @layer_norm_kernel(%arg0: i32, %arg1: memref<16x32xf32, #tpu.memory_space<vmem>>, %arg2: memref<16x32xf32, #tpu.memory_space<vmem>>) attributes {dimension_semantics = [#tpu.dimension_semantics<parallel>], iteration_bounds = array<i64: 1>, scalar_prefetch = 0 : i64, scratch_operands = 0 : i64, tpu.core_type = #tpu.core_type<tc>, window_params = [{transform_indices = @transform_0, window_bounds = array<i64: 16, 32>}, {transform_indices = @transform_1, window_bounds = array<i64: 16, 32>}]} {
    %c0 = arith.constant 0 : index
    %c0_0 = arith.constant 0 : index
    %0 = vector.load %arg1[%c0, %c0_0] : memref<16x32xf32, #tpu.memory_space<vmem>>, vector<16x32xf32>
    %cst = arith.constant dense<0.000000e+00> : vector<16xf32>
    %1 = vector.multi_reduction <add>, %0, %cst [1] : vector<16x32xf32> to vector<16xf32>
    %2 = vector.shape_cast %1 : vector<16xf32> to vector<16x1xf32>
    %cst_1 = arith.constant 3.200000e+01 : f32
    %3 = vector.broadcast %cst_1 : f32 to vector<16x1xf32>
    %4 = arith.divf %2, %3 : vector<16x1xf32>
    %5 = vector.broadcast %4 : vector<16x1xf32> to vector<16x32xf32>
    %6 = arith.subf %0, %5 : vector<16x32xf32>
    %7 = arith.mulf %6, %6 : vector<16x32xf32>
    %cst_2 = arith.constant dense<0.000000e+00> : vector<16xf32>
    %8 = vector.multi_reduction <add>, %7, %cst_2 [1] : vector<16x32xf32> to vector<16xf32>
    %9 = vector.shape_cast %8 : vector<16xf32> to vector<16x1xf32>
    %cst_3 = arith.constant 0.0322580636 : f32
    %10 = vector.broadcast %cst_3 : f32 to vector<16x1xf32>
    %11 = arith.mulf %9, %10 : vector<16x1xf32>
    %cst_4 = arith.constant 9.99999974E-6 : f32
    %12 = vector.broadcast %cst_4 : f32 to vector<16x1xf32>
    %13 = arith.addf %11, %12 : vector<16x1xf32>
    %14 = math.rsqrt %13 : vector<16x1xf32>
    %15 = vector.broadcast %14 : vector<16x1xf32> to vector<16x32xf32>
    %16 = arith.mulf %6, %15 : vector<16x32xf32>
    %c0_5 = arith.constant 0 : index
    %c0_6 = arith.constant 0 : index
    %17 = vector.load %arg2[%c0_5, %c0_6] : memref<16x32xf32, #tpu.memory_space<vmem>>, vector<16x32xf32>
    tpu.vector_store %arg2[%c0_5, %c0_6], %16 {strides = array<i32>} : memref<16x32xf32, #tpu.memory_space<vmem>>, vector<16x32xf32>,
    return
  }
  func.func @transform_0(%arg0: i32) -> (i32, i32) {
    %c0_i32 = arith.constant 0 : i32
    %c0_i32_0 = arith.constant 0 : i32
    return %arg0, %c0_i32 : i32, i32
  }
  func.func @transform_1(%arg0: i32) -> (i32, i32) {
    %c0_i32 = arith.constant 0 : i32
    %c0_i32_0 = arith.constant 0 : i32
    return %arg0, %c0_i32 : i32, i32
  }
}

</mosaic_0001>

<llo_original>
// kernel: tpu_custom_call.1
$region0: #{tpu_custom_call.1}
  #allocation0 [shape = 'u32[]', space=smem, size = 0x4, offset = 0x4, fixed_abs, tag = 'smem constant byte address 0x4 - core index']
  #allocation1 [shape = 'u32[72,128]{1,0:T(1,128)}', space=vmem, size = 0x9000, scoped, tag = 'internal scratch']
  %s0 = inlined_call_operand.hbm [shape: f32[16,32], index: 0, kind: input, shape index: {}]
  %s1 = inlined_call_operand.hbm [shape: f32[16,32], index: 1, kind: output, shape index: {}]
  %s2 = sld [smem:[#allocation0]]
  $region18: #{tpu_custom_call.1} parent=0
    _
  %s4 = ssub.s32 1, %s2
  %s5 = scalar_select 0, %s4, %s2
  $region1: #{tpu_custom_call.1} parent=0
    #allocation2 [shape = 'u8[8192]{0}', space=vmem, size = 0x2000, scoped, tag = 'input window, operand 0, single buffered']
    #allocation3 [shape = 's32[1]{0}', space=sflag, size = 0x4, scoped, tag = 'scoped memory for tpu_custom_call.1']
    #allocation4 [shape = 's32[1]{0}', space=sflag, size = 0x4, scoped, tag = 'scoped memory for tpu_custom_call.1']
    #allocation5 [shape = 'u8[8192]{0}', space=vmem, size = 0x2000, scoped, tag = 'output window, operand 0, single buffered']
    %6 = vsyncpa [#allocation3], 0
    %7 = vsyncpa [#allocation4], 0
    // Predicated region
    $region2: #{tpu_custom_call.1} parent=1 // pred_check
      _
    $region3: #{tpu_custom_call.1} parent=1 // pred_check_branch
      %9 = sbr.rel (0) target = $region5
    $region4: #{tpu_custom_call.1} parent=1 // pred_region
      %11 = vsyncadd [#allocation3], 0
      %s12 = sshll.u32 %s0, 4
      %s13 = int_to_ptr.hbm [resolvable:$true] %s12
      %s14 = sshll.u32 [#allocation2], 4
      %s15 = int_to_ptr.vmem [resolvable:$true] %s14
      %20 = dma.hbm_to_vmem [thread:$0]  %s13, 256, %s15, [#allocation3], 128, 128, 8
    $region5: #{tpu_custom_call.1} parent=1 // pred_fallthru
      _
    // Predicated region
    $region6: #{tpu_custom_call.1} parent=1 // pred_check
      _
    $region7: #{tpu_custom_call.1} parent=1 // pred_check_branch
      %22 = sbr.rel (0) target = $region9
    $region8: #{tpu_custom_call.1} parent=1 // pred_region
      %24 = dma.done [#allocation3], 256
    $region9: #{tpu_custom_call.1} parent=1 // pred_fallthru
      _
    %v25 = vld [vmem:[#allocation2] sm:$0xff]
    %v26 = vld [vmem:[#allocation2 + $0x8] sm:$0xff]
    %vm27 = vcmask 261120
    %v28 = vsel %vm27, %v25, 0.0
    %29 = vadd.xlane.f32.xlu0 %v28
    %v30 = vpop.xlane.xlu0 %29
    %v31 = vsel %vm27, %v26, 0.0
    %32 = vadd.xlane.f32.xlu0 %v31
    %v33 = vpop.xlane.xlu0 %32
    %v34 = vrcp.pop 32.0
    %v35 = vmul.f32 32.0, %v34
    %v36 = vsub.f32 1.0, %v35
    %v37 = vmul.f32 %v34, %v36
    %v38 = vadd.f32 %v34, %v37
    %vm39 = vweird.f32 %v34
    %v40 = vsel %vm39, %v34, %v38
    %v41 = vmul.f32 %v30, %v40
    %v42 = vmul.f32 %v33, %v40
    %v43 = vsub.f32 %v25, %v41
    %v44 = vsub.f32 %v26, %v42
    %v45 = vmul.f32 %v43, %v43
    %v46 = vmul.f32 %v44, %v44
    %v47 = vsel %vm27, %v45, 0.0
    %48 = vadd.xlane.f32.xlu0 %v47
    %v49 = vpop.xlane.xlu0 %48
    %v50 = vsel %vm27, %v46, 0.0
    %51 = vadd.xlane.f32.xlu0 %v50
    %v52 = vpop.xlane.xlu0 %51
    %v53 = vmul.f32 %v49, 0.032258064
    %v54 = vmul.f32 %v52, 0.032258064
    %v55 = vadd.f32 %v53, 1e-05
    %v56 = vadd.f32 %v54, 1e-05
    %v57 = vrsqrt.pop %v55
    %v58 = vmul.f32 %v57, %v55
    %v59 = vmul.f32 %v58, %v57
    %v60 = vmul.f32 0.5, %v59
    %v61 = vsub.f32 1.5, %v60
    %v62 = vmul.f32 %v57, %v61
    %vm63 = vweird.f32 %v55
    %vm64 = vweird.f32 %v57
    %vm65 = vmor %vm63, %vm64
    %v66 = vsel %vm65, %v57, %v62
    %v67 = vrsqrt.pop %v56
    %v68 = vmul.f32 %v67, %v56
    %v69 = vmul.f32 %v68, %v67
    %v70 = vmul.f32 0.5, %v69
    %v71 = vsub.f32 1.5, %v70
    %v72 = vmul.f32 %v67, %v71
    %vm73 = vweird.f32 %v56
    %vm74 = vweird.f32 %v67
    %vm75 = vmor %vm73, %vm74
    %v76 = vsel %vm75, %v67, %v72
    %v77 = vmul.f32 %v43, %v66
    %v78 = vmul.f32 %v44, %v76
    %79 = vst.msk [vmem:[#allocation5] sm:$0xff] %vm27, %v77
    %80 = vst.msk [vmem:[#allocation5 + $0x8] sm:$0xff] %vm27, %v78
    // Predicated region
    $region10: #{tpu_custom_call.1} parent=1 // pred_check
      _
    $region11: #{tpu_custom_call.1} parent=1 // pred_check_branch
      %82 = sbr.rel (0) target = $region13
    $region12: #{tpu_custom_call.1} parent=1 // pred_region
      %84 = vsyncadd [#allocation4], 0
      %s85 = sshll.u32 [#allocation5], 4
      %s86 = int_to_ptr.vmem [resolvable:$true] %s85
      %s87 = sshll.u32 %s1, 4
      %s88 = int_to_ptr.hbm [resolvable:$true] %s87
      %93 = dma.vmem_to_hbm [thread:$0]  %s86, 256, %s88, [#allocation4], 128, 128, 8
    $region13: #{tpu_custom_call.1} parent=1 // pred_fallthru
      _
    // Predicated region
    $region14: #{tpu_custom_call.1} parent=1 // pred_check
      _
    $region15: #{tpu_custom_call.1} parent=1 // pred_check_branch
      %95 = sbr.rel (0) target = $region17
    $region16: #{tpu_custom_call.1} parent=1 // pred_region
      %97 = dma.done [#allocation4], 256
    $region17: #{tpu_custom_call.1} parent=1 // pred_fallthru
      _
    %98 = vsyncpa [#allocation3], 1
    %99 = vsyncpa [#allocation4], 1

</llo_original>
